<compile_context>
chip_gen: v6e
topology: v6e:2x2x1
jax: 0.10.0
libtpu: 0.0.40
codegen_flags: <defaults>
</compile_context>

<pallas_src>
import functools

import jax
import jax.numpy as jnp
from jax.experimental import pallas as pl
from jax.experimental.pallas import tpu as pltpu


_VMEM_INPUT_BUDGET_BYTES = 24 * 1024 * 1024   # 2 inputs x 2 pipeline buffers + acc
_VMEM_LIMIT_BYTES = 32 * 1024 * 1024          # scoped-VMEM request (v5e default is 16 MiB)


def _cdiv(a, b):
    return -(-a // b)


def _round_up(x, m):
    return _cdiv(x, m) * m


def _sdne_se_loss_kernel(est_ref, sim_ref, out_ref, acc_ref, *,
                         beta_sq, total_rows, block_rows, steps_per_split):
    """Accumulate the sum of per-row weighted L2 norms for this split.

    est_ref : VMEM (block_rows, N) input tile (bf16 or f32)
    sim_ref : VMEM (block_rows, N) input tile (bf16 or f32)
    out_ref : VMEM (1, 8, 128) f32 per-split partial-sum block
    acc_ref : VMEM (block_rows, 1) f32 running per-row-slot accumulator
    """
    j = pl.program_id(1)

    @pl.when(j == 0)
    def _():
        acc_ref[...] = jnp.zeros_like(acc_ref)

    # Cast per-tile in VMEM (inputs may be bf16) and do all math in f32.
    # TODO(synk): on v7x with bf16 inputs the elementwise math could stay in
    # bf16 (f32 only for the accumulation) to relieve VALU pressure; kept in
    # f32 everywhere for accuracy and v5e (no bf16 VPU) compatibility.
    est = est_ref[...].astype(jnp.float32)
    sim = sim_ref[...].astype(jnp.float32)

    d = est - sim
    d2 = d * d
    # (diff * weight)^2 == d2           where sim == 0  (weight = 1)
    #                   == d2 * beta^2  elsewhere        (weight = beta)
    w2 = jnp.where(sim == 0.0, d2, d2 * jnp.float32(beta_sq))
    row_sq = jnp.sum(w2, axis=-1, keepdims=True)               # (block_rows, 1)

    # Mask padded rows of a partial last tile and fully-duplicated (clamped)
    # tiles of an odd split remainder: use the UNclamped global block index.
    g = pl.program_id(0) * steps_per_split + j
    row_ids = g * block_rows + jax.lax.broadcasted_iota(
        jnp.int32, row_sq.shape, 0)
    row_norm = jnp.where(row_ids < total_rows,
                         jnp.sqrt(row_sq), jnp.float32(0.0))   # (block_rows, 1)

    # Deferred reduction: pure elementwise VPU add per step; the cross-sublane
    # reduce to a scalar happens only once per split, below.
    acc_ref[...] += row_norm

    @pl.when(j == pl.num_programs(1) - 1)
    def _():
        out_ref[...] = jnp.broadcast_to(
            jnp.sum(acc_ref[...], keepdims=True), out_ref.shape)


def _sublane_multiple(itemsize):
    # Native packed tiling: (8,128) f32, (16,128) bf16, (32,128) int8/fp8.
    return max(8, 32 // int(itemsize))


def _choose_block_rows(B, N, input_bytes_per_row, sub,
                       vmem_budget_bytes=_VMEM_INPUT_BUDGET_BYTES):
    """Largest sublane-aligned row tile whose double-buffered inputs + the
    lane-padded (block_rows, 1) f32 accumulator fit the VMEM budget."""
    per_row = 2 * input_bytes_per_row + 512          # 2 pipeline buffers + acc pad
    rows = max(sub, vmem_budget_bytes // per_row)
    rows = min(rows, _round_up(B, sub))              # don't allocate beyond the batch
    return max(sub, (rows // sub) * sub)


def _default_num_splits():
    """2 on chips with two TensorCores (v7x); 1 on single-TC chips (v5e/v6e)."""
    try:
        kind = jax.devices()[0].device_kind.lower()
    except Exception:
        return 1
    return 2 if "7" in kind else 1


def sdne_se_loss(est_similarity, similarity, beta=2.0, *,
                 block_rows=None, num_splits=None):
    """Batch-mean L2 norm of beta-weighted (est - sim), matching SDNESELoss.forward."""
    B, N = est_similarity.shape
    assert similarity.shape == (B, N)

    i_est = jnp.dtype(est_similarity.dtype).itemsize
    i_sim = jnp.dtype(similarity.dtype).itemsize
    sub = _sublane_multiple(min(i_est, i_sim))

    if num_splits is None:
        num_splits = _default_num_splits()

    if block_rows is None:
        block_rows = _choose_block_rows(B, N, N * (i_est + i_sim), sub)
    assert block_rows % 8 == 0, "block_rows must be a multiple of 8 (sublane)"

    num_blocks = _cdiv(B, block_rows)
    num_splits = max(1, min(int(num_splits), num_blocks))

    # Prefer a block_rows that makes num_blocks a multiple of num_splits, so
    # the clamped-duplicate-tile fallback (wasted HBM traffic) never triggers.
    if num_splits > 1 and num_blocks % num_splits != 0:
        target_blocks = _round_up(num_blocks, num_splits)
        cand = _round_up(_cdiv(B, target_blocks), sub)
        if sub <= cand <= block_rows and _cdiv(B, cand) % num_splits == 0:
            block_rows = cand
            num_blocks = _cdiv(B, cand)

    steps_per_split = _cdiv(num_blocks, num_splits)
    needs_clamp = steps_per_split * num_splits != num_blocks
    last_block = num_blocks - 1

    if needs_clamp:
        def row_block_map(c, j):
            # Clamp so the DMA never targets a nonexistent block; the kernel
            # masks the duplicated tile via the unclamped global row index.
            return (jnp.minimum(c * steps_per_split + j, last_block), 0)
    else:
        def row_block_map(c, j):
            return (c * steps_per_split + j, 0)

    kernel = functools.partial(
        _sdne_se_loss_kernel,
        beta_sq=float(beta) ** 2,
        total_rows=B,
        block_rows=block_rows,
        steps_per_split=steps_per_split,
    )

    def _call(dim_sems):
        return pl.pallas_call(
            kernel,
            out_shape=jax.ShapeDtypeStruct((num_splits, 8, 128), jnp.float32),
            grid_spec=pltpu.PrefetchScalarGridSpec(
                num_scalar_prefetch=0,
                grid=(num_splits, steps_per_split),
                in_specs=[
                    pl.BlockSpec((block_rows, N), row_block_map),
                    pl.BlockSpec((block_rows, N), row_block_map),
                ],
                out_specs=pl.BlockSpec((1, 8, 128), lambda c, j: (c, 0, 0)),
                scratch_shapes=[pltpu.VMEM((block_rows, 1), jnp.float32)],
            ),
            compiler_params=pltpu.CompilerParams(
                dimension_semantics=dim_sems,
                vmem_limit_bytes=_VMEM_LIMIT_BYTES,
            ),
        )(est_similarity, similarity)

    if num_splits > 1:
        # Only CORE_PARALLEL actually shards the leading axis across the two
        # TensorCores on v7x; fall back to plain "parallel" if lowering balks.
        try:
            out = _call((pltpu.CORE_PARALLEL, pltpu.ARBITRARY))
        except Exception:
            out = _call(("parallel", "arbitrary"))
    else:
        out = _call(("arbitrary", "arbitrary"))

    # Per-split partial sums -> total, then batch mean.
    return jnp.sum(out[:, 0, 0]) / jnp.float32(B)


def _reference(est, sim, beta):
    est = est.astype(jnp.float32)
    sim = sim.astype(jnp.float32)
    weights = jnp.where(sim == 0.0, 1.0, beta)
    return jnp.mean(jnp.sqrt(jnp.sum(((est - sim) * weights) ** 2, axis=-1)))


if __name__ == "__main__":
    key = jax.random.PRNGKey(0)
    k1, k2, k3 = jax.random.split(key, 3)

    B, N = 50, 256
    beta = 2.0

    # Ground-truth similarity with many exact zeros (sparsity ~50%)
    sim_dense = jax.random.uniform(k1, (B, N), dtype=jnp.float32)
    mask = jax.random.uniform(k2, (B, N), dtype=jnp.float32) < 0.5
    similarity = jnp.where(mask, 0.0, sim_dense)

    # Estimated similarity
    est_similarity = jax.random.normal(k3, (B, N), dtype=jnp.float32) * 0.1 + similarity

    # 1) Default (auto) tile size: single block, row mask for padded rows.
    loss = jax.block_until_ready(sdne_se_loss(est_similarity, similarity, beta=beta))
    ref = _reference(est_similarity, similarity, beta)
    assert jnp.allclose(loss, ref, rtol=1e-5, atol=1e-5), (loss, ref)

    # 2) Small explicit tile: multi-step accumulation + partial last tile.
    loss2 = jax.block_until_ready(
        sdne_se_loss(est_similarity, similarity, beta=beta, block_rows=16))
    assert jnp.allclose(loss2, ref, rtol=1e-5, atol=1e-5), (loss2, ref)

    # 3) Odd number of row blocks: exercises the ragged-edge masking.
    est3, sim3 = est_similarity[:35], similarity[:35]
    loss3 = jax.block_until_ready(
        sdne_se_loss(est3, sim3, beta=beta, block_rows=16))
    ref3 = _reference(est3, sim3, beta)
    assert jnp.allclose(loss3, ref3, rtol=1e-5, atol=1e-5), (loss3, ref3)

    # 4) bf16 inputs stream at half width (16-row packed sublane rounding);
    #    math still done in f32 in-kernel.
    est_bf = est_similarity.astype(jnp.bfloat16)
    sim_bf = similarity.astype(jnp.bfloat16)
    loss4 = jax.block_until_ready(sdne_se_loss(est_bf, sim_bf, beta=beta))
    ref4 = _reference(est_bf, sim_bf, beta)
    assert jnp.allclose(loss4, ref4, rtol=1e-5, atol=1e-5), (loss4, ref4)

    print("KERNEL_OK")
</pallas_src>

<mosaic_0001>
module attributes {stable_mosaic.version = 11 : i64} {
  func.func @_sdne_se_loss_kernel(%arg0: i32, %arg1: i32, %arg2: memref<56x256xf32, #tpu.memory_space<vmem>>, %arg3: memref<56x256xf32, #tpu.memory_space<vmem>>, %arg4: memref<1x8x128xf32, #tpu.memory_space<vmem>>, %arg5: memref<56x1xf32, #tpu.memory_space<vmem>>) attributes {dimension_semantics = [#tpu.dimension_semantics<arbitrary>, #tpu.dimension_semantics<arbitrary>], iteration_bounds = array<i64: 1, 1>, scalar_prefetch = 0 : i64, scratch_operands = 1 : i64, tpu.core_type = #tpu.core_type<tc>, window_params = [{transform_indices = @transform_0, window_bounds = array<i64: 56, 256>}, {transform_indices = @transform_1, window_bounds = array<i64: 56, 256>}, {transform_indices = @transform_2, window_bounds = array<i64: 1, 8, 128>}]} {
    %c0_i32 = arith.constant 0 : i32
    %0 = arith.cmpi eq, %arg1, %c0_i32 : i32
    %1 = arith.extui %0 : i1 to i32
    %c0_i32_0 = arith.constant 0 : i32
    %2 = arith.cmpi ne, %1, %c0_i32_0 : i32
    scf.if %2 {
      %cst_13 = arith.constant 0.000000e+00 : f32
      %31 = vector.broadcast %cst_13 : f32 to vector<56x1xf32>
      %c0_14 = arith.constant 0 : index
      %c0_15 = arith.constant 0 : index
      %32 = vector.load %arg5[%c0_14, %c0_15] : memref<56x1xf32, #tpu.memory_space<vmem>>, vector<56x1xf32>
      tpu.vector_store %arg5[%c0_14, %c0_15], %31 {strides = array<i32>} : memref<56x1xf32, #tpu.memory_space<vmem>>, vector<56x1xf32>,
    } else {
    }
    %c0 = arith.constant 0 : index
    %c0_1 = arith.constant 0 : index
    %3 = vector.load %arg2[%c0, %c0_1] : memref<56x256xf32, #tpu.memory_space<vmem>>, vector<56x256xf32>
    %c0_2 = arith.constant 0 : index
    %c0_3 = arith.constant 0 : index
    %4 = vector.load %arg3[%c0_2, %c0_3] : memref<56x256xf32, #tpu.memory_space<vmem>>, vector<56x256xf32>
    %5 = arith.subf %3, %4 : vector<56x256xf32>
    %6 = arith.mulf %5, %5 : vector<56x256xf32>
    %cst = arith.constant 0.000000e+00 : f32
    %7 = vector.broadcast %cst : f32 to vector<56x256xf32>
    %8 = arith.cmpf oeq, %4, %7 : vector<56x256xf32>
    %cst_4 = arith.constant 4.000000e+00 : f32
    %9 = vector.broadcast %cst_4 : f32 to vector<56x256xf32>
    %10 = arith.mulf %6, %9 : vector<56x256xf32>
    %11 = arith.select %8, %6, %10 : vector<56x256xi1>, vector<56x256xf32>
    %cst_5 = arith.constant dense<0.000000e+00> : vector<56xf32>
    %12 = vector.multi_reduction <add>, %11, %cst_5 [1] : vector<56x256xf32> to vector<56xf32>
    %13 = vector.shape_cast %12 : vector<56xf32> to vector<56x1xf32>
    %c1_i32 = arith.constant 1 : i32
    %14 = arith.muli %arg0, %c1_i32 : i32
    %15 = arith.addi %14, %arg1 : i32
    %c56_i32 = arith.constant 56 : i32
    %16 = arith.muli %15, %c56_i32 : i32
    %17 = tpu.iota {dimensions = array<i32: 0>} : vector<56x1xi32>
    %18 = vector.broadcast %16 : i32 to vector<56x1xi32>
    %19 = arith.addi %18, %17 : vector<56x1xi32>
    %c50_i32 = arith.constant 50 : i32
    %20 = vector.broadcast %c50_i32 : i32 to vector<56x1xi32>
    %21 = arith.cmpi slt, %19, %20 : vector<56x1xi32>
    %22 = math.sqrt %13 : vector<56x1xf32>
    %cst_6 = arith.constant 0.000000e+00 : f32
    %23 = vector.broadcast %cst_6 : f32 to vector<56x1xf32>
    %24 = arith.select %21, %22, %23 : vector<56x1xi1>, vector<56x1xf32>
    %c0_7 = arith.constant 0 : index
    %c0_8 = arith.constant 0 : index
    %25 = vector.load %arg5[%c0_7, %c0_8] : memref<56x1xf32, #tpu.memory_space<vmem>>, vector<56x1xf32>
    %26 = arith.addf %25, %24 : vector<56x1xf32>
    %c0_9 = arith.constant 0 : index
    %c0_10 = arith.constant 0 : index
    %27 = vector.load %arg5[%c0_9, %c0_10] : memref<56x1xf32, #tpu.memory_space<vmem>>, vector<56x1xf32>
    tpu.vector_store %arg5[%c0_9, %c0_10], %26 {strides = array<i32>} : memref<56x1xf32, #tpu.memory_space<vmem>>, vector<56x1xf32>,
    %c0_i32_11 = arith.constant 0 : i32
    %28 = arith.cmpi eq, %arg1, %c0_i32_11 : i32
    %29 = arith.extui %28 : i1 to i32
    %c0_i32_12 = arith.constant 0 : i32
    %30 = arith.cmpi ne, %29, %c0_i32_12 : i32
    scf.if %30 {
      %c0_13 = arith.constant 0 : index
      %c0_14 = arith.constant 0 : index
      %31 = vector.load %arg5[%c0_13, %c0_14] : memref<56x1xf32, #tpu.memory_space<vmem>>, vector<56x1xf32>
      %32 = vector.shape_cast %31 : vector<56x1xf32> to vector<1x56x1xf32>
      %cst_15 = arith.constant dense<0.000000e+00> : vector<1xf32>
      %33 = vector.multi_reduction <add>, %32, %cst_15 [1, 2] : vector<1x56x1xf32> to vector<1xf32>
      %34 = vector.shape_cast %33 : vector<1xf32> to vector<1x1x1xf32>
      %35 = vector.extract %34[0, 0, 0] : f32 from vector<1x1x1xf32>
      %36 = vector.broadcast %35 : f32 to vector<1x1xf32>
      %37 = vector.shape_cast %36 : vector<1x1xf32> to vector<1x1x1xf32>
      %38 = vector.broadcast %37 : vector<1x1x1xf32> to vector<1x8x128xf32>
      %c0_16 = arith.constant 0 : index
      %c0_17 = arith.constant 0 : index
      %c0_18 = arith.constant 0 : index
      %39 = vector.load %arg4[%c0_16, %c0_17, %c0_18] : memref<1x8x128xf32, #tpu.memory_space<vmem>>, vector<1x8x128xf32>
      tpu.vector_store %arg4[%c0_16, %c0_17, %c0_18], %38 {strides = array<i32>} : memref<1x8x128xf32, #tpu.memory_space<vmem>>, vector<1x8x128xf32>,
    } else {
    }
    return
  }
  func.func @transform_0(%arg0: i32, %arg1: i32) -> (i32, i32) {
    %c1_i32 = arith.constant 1 : i32
    %0 = arith.muli %arg0, %c1_i32 : i32
    %1 = arith.addi %0, %arg1 : i32
    %c0_i32 = arith.constant 0 : i32
    %c0_i32_0 = arith.constant 0 : i32
    return %1, %c0_i32 : i32, i32
  }
  func.func @transform_1(%arg0: i32, %arg1: i32) -> (i32, i32) {
    %c1_i32 = arith.constant 1 : i32
    %0 = arith.muli %arg0, %c1_i32 : i32
    %1 = arith.addi %0, %arg1 : i32
    %c0_i32 = arith.constant 0 : i32
    %c0_i32_0 = arith.constant 0 : i32
    return %1, %c0_i32 : i32, i32
  }
  func.func @transform_2(%arg0: i32, %arg1: i32) -> (i32, i32, i32) {
    %c0_i32 = arith.constant 0 : i32
    %c0_i32_0 = arith.constant 0 : i32
    %c0_i32_1 = arith.constant 0 : i32
    return %arg0, %c0_i32, %c0_i32_0 : i32, i32, i32
  }
}

</mosaic_0001>

<llo_original>
// kernel: tpu_custom_call.1
$region0: #{tpu_custom_call.1}
  #allocation0 [shape = 'u32[]', space=smem, size = 0x4, offset = 0x4, fixed_abs, tag = 'smem constant byte address 0x4 - core index']
  #allocation1 [shape = 'u32[144,128]{1,0:T(1,128)}', space=vmem, size = 0x12000, scoped, tag = 'internal scratch']
  #allocation2 [shape = 'f32[56,1]{1,0:T(8,128)}', space=vmem, size = 0x7000, scoped, tag = 'scratch operand']
  %s0 = inlined_call_operand.hbm [shape: f32[50,256], index: 0, kind: input, shape index: {}]
  %s1 = inlined_call_operand.hbm [shape: f32[50,256], index: 1, kind: input, shape index: {}]
  %s2 = inlined_call_operand.hbm [shape: f32[1,8,128], index: 2, kind: output, shape index: {}]
  %s3 = sld [smem:[#allocation0]]
  $region34: #{tpu_custom_call.1} parent=0
    _
  %s5 = ssub.s32 1, %s3
  %s6 = scalar_select 0, %s5, %s3
  $region1: #{tpu_custom_call.1} parent=0
    #allocation3 [shape = 'u8[57344]{0}', space=vmem, size = 0xe000, scoped, tag = 'input window, operand 0, single buffered']
    #allocation4 [shape = 's32[1]{0}', space=sflag, size = 0x4, scoped, tag = 'scoped memory for tpu_custom_call.1']
    #allocation5 [shape = 's32[1]{0}', space=sflag, size = 0x4, scoped, tag = 'scoped memory for tpu_custom_call.1']
    #allocation6 [shape = 'u8[57344]{0}', space=vmem, size = 0xe000, scoped, tag = 'input window, operand 1, single buffered']
    #allocation7 [shape = 's32[1]{0}', space=sflag, size = 0x4, scoped, tag = 'scoped memory for tpu_custom_call.1']
    #allocation8 [shape = 'u8[4096]{0}', space=vmem, size = 0x1000, scoped, tag = 'output window, operand 0, single buffered']
    %7 = vsyncpa [#allocation4], 0
    %8 = vsyncpa [#allocation7], 0
    %9 = vsyncpa [#allocation5], 0
    // Predicated region
    $region2: #{tpu_custom_call.1} parent=1 // pred_check
      _
    $region3: #{tpu_custom_call.1} parent=1 // pred_check_branch
      %11 = sbr.rel (0) target = $region5
    $region4: #{tpu_custom_call.1} parent=1 // pred_region
      %s12 = sadd.s32 0, 0
      %s13 = smul.u32 7, %s12
      %s15 = ssub.s32 1792, 1792
      %16 = vsyncadd [#allocation4], %s15
      %s17 = smul.addr %s13, 2
      %s18 = smul.addr %s17, 128
      %s19 = scalar_lea.hbm %s0, %s18
      %s20 = sshll.u32 [#allocation3], 4
      %s21 = int_to_ptr.vmem [resolvable:$true] %s20
      %26 = dma.hbm_to_vmem [thread:$0]  %s19, 1792, %s21, [#allocation4], 256, 256, 16
    $region5: #{tpu_custom_call.1} parent=1 // pred_fallthru
      _
    // Predicated region
    $region6: #{tpu_custom_call.1} parent=1 // pred_check
      _
    $region7: #{tpu_custom_call.1} parent=1 // pred_check_branch
      %28 = sbr.rel (0) target = $region9
    $region8: #{tpu_custom_call.1} parent=1 // pred_region
      %s29 = sadd.s32 0, 0
      %s30 = smul.u32 7, %s29
      %s32 = ssub.s32 1792, 1792
      %33 = vsyncadd [#allocation7], %s32
      %s34 = smul.addr %s30, 2
      %s35 = smul.addr %s34, 128
      %s36 = scalar_lea.hbm %s1, %s35
      %s37 = sshll.u32 [#allocation6], 4
      %s38 = int_to_ptr.vmem [resolvable:$true] %s37
      %43 = dma.hbm_to_vmem [thread:$0]  %s36, 1792, %s38, [#allocation7], 256, 256, 16
    $region9: #{tpu_custom_call.1} parent=1 // pred_fallthru
      _
    // Predicated region
    $region10: #{tpu_custom_call.1} parent=1 // pred_check
      _
    $region11: #{tpu_custom_call.1} parent=1 // pred_check_branch
      %45 = sbr.rel (0) target = $region13
    $region12: #{tpu_custom_call.1} parent=1 // pred_region
      %46 = dma.done [#allocation4], 1792
    $region13: #{tpu_custom_call.1} parent=1 // pred_fallthru
      _
    // Predicated region
    $region14: #{tpu_custom_call.1} parent=1 // pred_check
      _
    $region15: #{tpu_custom_call.1} parent=1 // pred_check_branch
      %48 = sbr.rel (0) target = $region17
    $region16: #{tpu_custom_call.1} parent=1 // pred_region
      %49 = dma.done [#allocation7], 1792
    $region17: #{tpu_custom_call.1} parent=1 // pred_fallthru
      _
    %s50 = sadd.s32 0, 0
    %s51 = smul.u32 7, %s50
    %s52 = sadd.s32 0, 0
    %s53 = smul.u32 7, %s52
    %p54 = scmp.eq.s32.totalorder 0, 0
    // Predicated region
    $region18: #{tpu_custom_call.1} parent=1 // pred_check
      %p55 = pneg %p54
    $region19: #{tpu_custom_call.1} parent=1 // pred_check_branch
      %57 = sbr.rel (%p55) target = $region21
    $region20: #{tpu_custom_call.1} parent=1 // pred_region
      %vm58 = vcmask 7168
      %59 = vst.msk [vmem:[#allocation2] sm:$0xff] %vm58, 0.0
      %60 = vst.msk [vmem:[#allocation2 + $0x8] sm:$0xff] %vm58, 0.0
      %61 = vst.msk [vmem:[#allocation2 + $0x10] sm:$0xff] %vm58, 0.0
      %62 = vst.msk [vmem:[#allocation2 + $0x18] sm:$0xff] %vm58, 0.0
      %63 = vst.msk [vmem:[#allocation2 + $0x20] sm:$0xff] %vm58, 0.0
      %64 = vst.msk [vmem:[#allocation2 + $0x28] sm:$0xff] %vm58, 0.0
      %65 = vst.msk [vmem:[#allocation2 + $0x30] sm:$0xff] %vm58, 0.0
    $region21: #{tpu_custom_call.1} parent=1 // pred_fallthru
      _
    %v66 = vld [vmem:[#allocation3] sm:$0xff]
    %v67 = vld [vmem:[#allocation3 + $0x8] sm:$0xff]
    %v68 = vld [vmem:[#allocation3 + $0x10] sm:$0xff]
    %v69 = vld [vmem:[#allocation3 + $0x18] sm:$0xff]
    %v70 = vld [vmem:[#allocation3 + $0x20] sm:$0xff]
    %v71 = vld [vmem:[#allocation3 + $0x28] sm:$0xff]
    %v72 = vld [vmem:[#allocation3 + $0x30] sm:$0xff]
    %v73 = vld [vmem:[#allocation3 + $0x38] sm:$0xff]
    %v74 = vld [vmem:[#allocation3 + $0x40] sm:$0xff]
    %v75 = vld [vmem:[#allocation3 + $0x48] sm:$0xff]
    %v76 = vld [vmem:[#allocation3 + $0x50] sm:$0xff]
    %v77 = vld [vmem:[#allocation3 + $0x58] sm:$0xff]
    %v78 = vld [vmem:[#allocation3 + $0x60] sm:$0xff]
    %v79 = vld [vmem:[#allocation3 + $0x68] sm:$0xff]
    %v80 = vld [vmem:[#allocation6] sm:$0xff]
    %v81 = vld [vmem:[#allocation6 + $0x8] sm:$0xff]
    %v82 = vld [vmem:[#allocation6 + $0x10] sm:$0xff]
    %v83 = vld [vmem:[#allocation6 + $0x18] sm:$0xff]
    %v84 = vld [vmem:[#allocation6 + $0x20] sm:$0xff]
    %v85 = vld [vmem:[#allocation6 + $0x28] sm:$0xff]
    %v86 = vld [vmem:[#allocation6 + $0x30] sm:$0xff]
    %v87 = vld [vmem:[#allocation6 + $0x38] sm:$0xff]
    %v88 = vld [vmem:[#allocation6 + $0x40] sm:$0xff]
    %v89 = vld [vmem:[#allocation6 + $0x48] sm:$0xff]
    %v90 = vld [vmem:[#allocation6 + $0x50] sm:$0xff]
    %v91 = vld [vmem:[#allocation6 + $0x58] sm:$0xff]
    %v92 = vld [vmem:[#allocation6 + $0x60] sm:$0xff]
    %v93 = vld [vmem:[#allocation6 + $0x68] sm:$0xff]
    %v94 = vsub.f32 %v66, %v80
    %v95 = vsub.f32 %v67, %v81
    %v96 = vsub.f32 %v68, %v82
    %v97 = vsub.f32 %v69, %v83
    %v98 = vsub.f32 %v70, %v84
    %v99 = vsub.f32 %v71, %v85
    %v100 = vsub.f32 %v72, %v86
    %v101 = vsub.f32 %v73, %v87
    %v102 = vsub.f32 %v74, %v88
    %v103 = vsub.f32 %v75, %v89
    %v104 = vsub.f32 %v76, %v90
    %v105 = vsub.f32 %v77, %v91
    %v106 = vsub.f32 %v78, %v92
    %v107 = vsub.f32 %v79, %v93
    %v108 = vmul.f32 %v94, %v94
    %v109 = vmul.f32 %v95, %v95
    %v110 = vmul.f32 %v96, %v96
    %v111 = vmul.f32 %v97, %v97
    %v112 = vmul.f32 %v98, %v98
    %v113 = vmul.f32 %v99, %v99
    %v114 = vmul.f32 %v100, %v100
    %v115 = vmul.f32 %v101, %v101
    %v116 = vmul.f32 %v102, %v102
    %v117 = vmul.f32 %v103, %v103
    %v118 = vmul.f32 %v104, %v104
    %v119 = vmul.f32 %v105, %v105
    %v120 = vmul.f32 %v106, %v106
    %v121 = vmul.f32 %v107, %v107
    %vm122 = vcmp.eq.f32.partialorder %v80, 0.0
    %vm123 = vcmp.eq.f32.partialorder %v81, 0.0
    %vm124 = vcmp.eq.f32.partialorder %v82, 0.0
    %vm125 = vcmp.eq.f32.partialorder %v83, 0.0
    %vm126 = vcmp.eq.f32.partialorder %v84, 0.0
    %vm127 = vcmp.eq.f32.partialorder %v85, 0.0
    %vm128 = vcmp.eq.f32.partialorder %v86, 0.0
    %vm129 = vcmp.eq.f32.partialorder %v87, 0.0
    %vm130 = vcmp.eq.f32.partialorder %v88, 0.0
    %vm131 = vcmp.eq.f32.partialorder %v89, 0.0
    %vm132 = vcmp.eq.f32.partialorder %v90, 0.0
    %vm133 = vcmp.eq.f32.partialorder %v91, 0.0
    %vm134 = vcmp.eq.f32.partialorder %v92, 0.0
    %vm135 = vcmp.eq.f32.partialorder %v93, 0.0
    %v136 = vmul.f32 %v108, 4.0
    %v137 = vmul.f32 %v109, 4.0
    %v138 = vmul.f32 %v110, 4.0
    %v139 = vmul.f32 %v111, 4.0
    %v140 = vmul.f32 %v112, 4.0
    %v141 = vmul.f32 %v113, 4.0
    %v142 = vmul.f32 %v114, 4.0
    %v143 = vmul.f32 %v115, 4.0
    %v144 = vmul.f32 %v116, 4.0
    %v145 = vmul.f32 %v117, 4.0
    %v146 = vmul.f32 %v118, 4.0
    %v147 = vmul.f32 %v119, 4.0
    %v148 = vmul.f32 %v120, 4.0
    %v149 = vmul.f32 %v121, 4.0
    %v150 = vsel %vm122, %v108, %v136
    %v151 = vsel %vm123, %v109, %v137
    %v152 = vsel %vm124, %v110, %v138
    %v153 = vsel %vm125, %v111, %v139
    %v154 = vsel %vm126, %v112, %v140
    %v155 = vsel %vm127, %v113, %v141
    %v156 = vsel %vm128, %v114, %v142
    %v157 = vsel %vm129, %v115, %v143
    %v158 = vsel %vm130, %v116, %v144
    %v159 = vsel %vm131, %v117, %v145
    %v160 = vsel %vm132, %v118, %v146
    %v161 = vsel %vm133, %v119, %v147
    %v162 = vsel %vm134, %v120, %v148
    %v163 = vsel %vm135, %v121, %v149
    %v164 = vadd.f32 %v150, %v151
    %165 = vadd.xlane.f32.xlu0 %v164
    %v166 = vpop.xlane.xlu0 %165
    %v167 = vadd.f32 %v152, %v153
    %168 = vadd.xlane.f32.xlu0 %v167
    %v169 = vpop.xlane.xlu0 %168
    %v170 = vadd.f32 %v154, %v155
    %171 = vadd.xlane.f32.xlu0 %v170
    %v172 = vpop.xlane.xlu0 %171
    %v173 = vadd.f32 %v156, %v157
    %174 = vadd.xlane.f32.xlu0 %v173
    %v175 = vpop.xlane.xlu0 %174
    %v176 = vadd.f32 %v158, %v159
    %177 = vadd.xlane.f32.xlu0 %v176
    %v178 = vpop.xlane.xlu0 %177
    %v179 = vadd.f32 %v160, %v161
    %180 = vadd.xlane.f32.xlu0 %v179
    %v181 = vpop.xlane.xlu0 %180
    %v182 = vadd.f32 %v162, %v163
    %183 = vadd.xlane.f32.xlu0 %v182
    %v184 = vpop.xlane.xlu0 %183
    %s185 = sadd.s32 0, 0
    %s186 = smul.u32 %s185, 56
    %v187 = vlaneseq
    %v188 = vshrl.u32 %v187, 7
    %v189 = vadd.s32 %v188, 8
    %v190 = vadd.s32 %v188, 16
    %v191 = vadd.s32 %v188, 24
    %v192 = vadd.s32 %v188, 32
    %v193 = vadd.s32 %v188, 40
    %v194 = vadd.s32 %v188, 48
    %v195 = vstv %s186
    %v196 = vadd.s32 %v195, %v188
    %v197 = vadd.s32 %v195, %v189
    %v198 = vadd.s32 %v195, %v190
    %v199 = vadd.s32 %v195, %v191
    %v200 = vadd.s32 %v195, %v192
    %v201 = vadd.s32 %v195, %v193
    %v202 = vadd.s32 %v195, %v194
    %vm203 = vcmp.lt.s32.totalorder %v196, 50
    %vm204 = vcmp.lt.s32.totalorder %v197, 50
    %vm205 = vcmp.lt.s32.totalorder %v198, 50
    %vm206 = vcmp.lt.s32.totalorder %v199, 50
    %vm207 = vcmp.lt.s32.totalorder %v200, 50
    %vm208 = vcmp.lt.s32.totalorder %v201, 50
    %vm209 = vcmp.lt.s32.totalorder %v202, 50
    %v210 = vrsqrt.pop %v166
    %v211 = vmul.f32 %v166, %v210
    %vm212 = vcmp.eq.f32.partialorder %v166, inf
    %v213 = vsel %vm212, %v166, %v211
    %vm214 = vcmp.eq.f32.partialorder %v166, 0.0
    %v215 = vand.u32 %v166, 2147483648
    %v216 = vsel %vm214, %v215, %v213
    %v217 = vrsqrt.pop %v169
    %v218 = vmul.f32 %v169, %v217
    %vm219 = vcmp.eq.f32.partialorder %v169, inf
    %v220 = vsel %vm219, %v169, %v218
    %vm221 = vcmp.eq.f32.partialorder %v169, 0.0
    %v222 = vand.u32 %v169, 2147483648
    %v223 = vsel %vm221, %v222, %v220
    %v224 = vrsqrt.pop %v172
    %v225 = vmul.f32 %v172, %v224
    %vm226 = vcmp.eq.f32.partialorder %v172, inf
    %v227 = vsel %vm226, %v172, %v225
    %vm228 = vcmp.eq.f32.partialorder %v172, 0.0
    %v229 = vand.u32 %v172, 2147483648
    %v230 = vsel %vm228, %v229, %v227
    %v231 = vrsqrt.pop %v175
    %v232 = vmul.f32 %v175, %v231
    %vm233 = vcmp.eq.f32.partialorder %v175, inf
    %v234 = vsel %vm233, %v175, %v232
    %vm235 = vcmp.eq.f32.partialorder %v175, 0.0
    %v236 = vand.u32 %v175, 2147483648
    %v237 = vsel %vm235, %v236, %v234
    %v238 = vrsqrt.pop %v178
    %v239 = vmul.f32 %v178, %v238
    %vm240 = vcmp.eq.f32.partialorder %v178, inf
    %v241 = vsel %vm240, %v178, %v239
    %vm242 = vcmp.eq.f32.partialorder %v178, 0.0
    %v243 = vand.u32 %v178, 2147483648
    %v244 = vsel %vm242, %v243, %v241
    %v245 = vrsqrt.pop %v181
    %v246 = vmul.f32 %v181, %v245
    %vm247 = vcmp.eq.f32.partialorder %v181, inf
    %v248 = vsel %vm247, %v181, %v246
    %vm249 = vcmp.eq.f32.partialorder %v181, 0.0
    %v250 = vand.u32 %v181, 2147483648
    %v251 = vsel %vm249, %v250, %v248
    %v252 = vrsqrt.pop %v184
    %v253 = vmul.f32 %v184, %v252
    %vm254 = vcmp.eq.f32.partialorder %v184, inf
    %v255 = vsel %vm254, %v184, %v253
    %vm256 = vcmp.eq.f32.partialorder %v184, 0.0
    %v257 = vand.u32 %v184, 2147483648
    %v258 = vsel %vm256, %v257, %v255
    %v259 = vsel %vm203, %v216, 0.0
    %v260 = vsel %vm204, %v223, 0.0
    %v261 = vsel %vm205, %v230, 0.0
    %v262 = vsel %vm206, %v237, 0.0
    %v263 = vsel %vm207, %v244, 0.0
    %v264 = vsel %vm208, %v251, 0.0
    %v265 = vsel %vm209, %v258, 0.0
    %v266 = vld [vmem:[#allocation2] sm:$0xff]
    %v267 = vld [vmem:[#allocation2 + $0x8] sm:$0xff]
    %v268 = vld [vmem:[#allocation2 + $0x10] sm:$0xff]
    %v269 = vld [vmem:[#allocation2 + $0x18] sm:$0xff]
    %v270 = vld [vmem:[#allocation2 + $0x20] sm:$0xff]
    %v271 = vld [vmem:[#allocation2 + $0x28] sm:$0xff]
    %v272 = vld [vmem:[#allocation2 + $0x30] sm:$0xff]
    %v273 = vadd.f32 %v266, %v259
    %v274 = vadd.f32 %v267, %v260
    %v275 = vadd.f32 %v268, %v261
    %v276 = vadd.f32 %v269, %v262
    %v277 = vadd.f32 %v270, %v263
    %v278 = vadd.f32 %v271, %v264
    %v279 = vadd.f32 %v272, %v265
    %vm280 = vcmask 7168
    %281 = vst.msk [vmem:[#allocation2] sm:$0xff] %vm280, %v273
    %282 = vst.msk [vmem:[#allocation2 + $0x8] sm:$0xff] %vm280, %v274
    %283 = vst.msk [vmem:[#allocation2 + $0x10] sm:$0xff] %vm280, %v275
    %284 = vst.msk [vmem:[#allocation2 + $0x18] sm:$0xff] %vm280, %v276
    %285 = vst.msk [vmem:[#allocation2 + $0x20] sm:$0xff] %vm280, %v277
    %286 = vst.msk [vmem:[#allocation2 + $0x28] sm:$0xff] %vm280, %v278
    %287 = vst.msk [vmem:[#allocation2 + $0x30] sm:$0xff] %vm280, %v279
    // Predicated region
    $region22: #{tpu_custom_call.1} parent=1 // pred_check
      %p288 = pneg %p54
    $region23: #{tpu_custom_call.1} parent=1 // pred_check_branch
      %290 = sbr.rel (%p288) target = $region25
    $region24: #{tpu_custom_call.1} parent=1 // pred_region
      %v291 = vld [vmem:[#allocation2] sm:$0xff]
      %v292 = vld [vmem:[#allocation2 + $0x8] sm:$0xff]
      %v293 = vld [vmem:[#allocation2 + $0x10] sm:$0xff]
      %v294 = vld [vmem:[#allocation2 + $0x18] sm:$0xff]
      %v295 = vld [vmem:[#allocation2 + $0x20] sm:$0xff]
      %v296 = vld [vmem:[#allocation2 + $0x28] sm:$0xff]
      %v297 = vld [vmem:[#allocation2 + $0x30] sm:$0xff]
      %v298 = vsel %vm280, %v291, 0.0
      %v299 = vsel %vm280, %v292, 0.0
      %v300 = vadd.f32 %v298, %v299
      %v301 = vsel %vm280, %v293, 0.0
      %v302 = vadd.f32 %v300, %v301
      %v303 = vsel %vm280, %v294, 0.0
      %v304 = vadd.f32 %v302, %v303
      %v305 = vsel %vm280, %v295, 0.0
      %v306 = vadd.f32 %v304, %v305
      %v307 = vsel %vm280, %v296, 0.0
      %v308 = vadd.f32 %v306, %v307
      %v309 = vsel %vm280, %v297, 0.0
      %v310 = vadd.f32 %v308, %v309
      %311 = vadd.xlane.f32.xlu0 %v310
      %v312 = vpop.xlane.xlu0 %311
      %v313 = vrot.slane %v312, 4
      %v314 = vadd.f32 %v312, %v313
      %v315 = vrot.slane %v314, 2
      %v316 = vadd.f32 %v314, %v315
      %v317 = vrot.slane %v316, 1
      %v318 = vadd.f32 %v316, %v317
      %s319 = vtos %v318
      %v320 = vstv %s319
      %321 = vst [vmem:[#allocation8] sm:$0xff] %v320
    $region25: #{tpu_custom_call.1} parent=1 // pred_fallthru
      _
    // Predicated region
    $region26: #{tpu_custom_call.1} parent=1 // pred_check
      _
    $region27: #{tpu_custom_call.1} parent=1 // pred_check_branch
      %323 = sbr.rel (0) target = $region29
    $region28: #{tpu_custom_call.1} parent=1 // pred_region
      %s325 = ssub.s32 128, 128
      %326 = vsyncadd [#allocation5], %s325
      %s328 = sshll.u32 [#allocation8], 4
      %s329 = int_to_ptr.vmem [resolvable:$true] %s328
      %331 = dma.vmem_to_hbm [thread:$0]  %s329, 128, %s2, [#allocation5]
    $region29: #{tpu_custom_call.1} parent=1 // pred_fallthru
      _
    // Predicated region
    $region30: #{tpu_custom_call.1} parent=1 // pred_check
      _
    $region31: #{tpu_custom_call.1} parent=1 // pred_check_branch
      %333 = sbr.rel (0) target = $region33
    $region32: #{tpu_custom_call.1} parent=1 // pred_region
      %334 = dma.done [#allocation5], 128
    $region33: #{tpu_custom_call.1} parent=1 // pred_fallthru
      _
    %335 = vsyncpa [#allocation4], 1
    %336 = vsyncpa [#allocation7], 1
    %337 = vsyncpa [#allocation5], 1

</llo_original>
